<compile_context>
chip_gen: v7x
topology: tpu7x:2x2x1
jax: 0.10.0
libtpu: 0.0.40
codegen_flags: <defaults>
</compile_context>

<pallas_src>
import jax
import jax.numpy as jnp
from jax.experimental import pallas as pl
from jax.experimental.pallas import tpu as pltpu


def _damping_kernel(x_ref, f_ref, o_ref):
    # x_ref: (bt, d)       batch tile of the growth tensor (time dim squeezed)
    # f_ref: (tt, d)       time tile of the damping factors (pre-broadcast per head)
    # o_ref: (bt, tt, d)   damped growth tile
    x = x_ref[...]                                    # (bt, d)
    f = f_ref[...]                                    # (tt, d)
    # Single VPU broadcast-multiply; d maps to lanes so the store is a
    # lane-dense unmasked vst (important on v5e's single store slot).
    o_ref[...] = (x[:, None, :] * f[None, :, :]).astype(o_ref.dtype)


def _pick_tile(total, cap, quantum=8):
    """Largest legal tile along a sublane dim: either == total, or a multiple of
    `quantum` (8).  Prefers exact divisors of `total` so the last grid step is
    not a masked partial tile."""
    cap = max(1, cap)
    if total <= cap:
        return total
    cap_q = max(quantum, (cap // quantum) * quantum)
    t = cap_q
    while t >= quantum:
        if total % t == 0:
            return t
        t -= quantum
    return cap_q   # no dividing multiple of 8 -> accept a masked partial last tile


def _choose_tiles(b, pred_len, d, itemsize, *, target_bytes, vmem_budget, min_steps=2):
    """Pick (batch_tile, time_tile) so the output tile is ~target_bytes,
    (8,128)-legal, inside the VMEM budget, with >= min_steps grid steps."""
    row_bytes = d * itemsize                       # bytes of one (1, d) slab
    bt_min = b if b <= 8 else 8                    # smallest legal batch tile

    # Time tile: keep the full horizon when even a minimal batch tile stays
    # under target; otherwise tile time so tiles stay large independent of b.
    if bt_min * pred_len * row_bytes <= target_bytes:
        tt = pred_len
    else:
        tt = _pick_tile(pred_len, target_bytes // (bt_min * row_bytes))

    # Batch tile: fill the remaining target with batch rows (multiple of 8 / == b).
    bt = _pick_tile(b, max(1, target_bytes // (tt * row_bytes)))

    def n_steps(bt_, tt_):
        return pl.cdiv(b, bt_) * pl.cdiv(pred_len, tt_)

    def vmem_bytes(bt_, tt_):
        # double-buffered output + double-buffered x tile + double-buffered factors
        return 2 * (bt_ * tt_ + bt_ + tt_) * row_bytes

    # Keep >= min_steps grid steps (both v7x TensorCores get work, pipeline
    # overlaps) and stay inside the VMEM budget.  Loop strictly decreases a
    # tile each iteration, so it terminates.
    for _ in range(64):
        if n_steps(bt, tt) >= min_steps and vmem_bytes(bt, tt) <= vmem_budget:
            break
        if bt >= 16:
            bt = _pick_tile(b, bt // 2)
        elif tt >= 16:
            tt = _pick_tile(pred_len, tt // 2)
        elif bt == b and b > 8:
            bt = 8
        else:
            break                                  # too small to split legally
    return bt, tt, vmem_bytes(bt, tt)


def damping_layer(x, damping_logits, *, pred_len, nhead):
    """x: (b, 1, d) float32, damping_logits: (1, nhead) float32 -> (b, pred_len, d)."""
    b, one, d = x.shape
    assert one == 1, "expected growth tensor of shape (b, 1, d)"
    assert d % nhead == 0
    d_head = d // nhead
    itemsize = jnp.dtype(x.dtype).itemsize

    # --- Grid-invariant damping factors (hoisted out of the kernel grid) -----
    # sigmoid -> per-step powers -> cumulative sum; then repeat per head so the
    # kernel sees a lane-aligned (pred_len, d) slab.
    damping = jax.nn.sigmoid(damping_logits.astype(jnp.float32))          # (1, nhead)
    powers = jnp.arange(1, pred_len + 1, dtype=jnp.float32)[:, None]      # (T, 1)
    factors = jnp.cumsum(damping ** powers, axis=0)                       # (T, nhead)
    factors_full = jnp.repeat(factors, d_head, axis=1).astype(x.dtype)    # (T, d)

    x2 = x[:, 0, :]                                                       # (b, d)

    # --- Per-generation VMEM budget / tile target --------------------------
    # v5e/v6e: 128 MiB VMEM -> 40 MiB budget, ~10 MiB tiles.
    # v7x:      64 MiB VMEM -> 32 MiB budget, ~ 8 MiB tiles.
    try:
        vmem_capacity = getattr(pltpu.get_tpu_info(), "vmem_capacity_bytes", None)
    except Exception:
        vmem_capacity = None
    if not vmem_capacity:
        vmem_capacity = 64 << 20          # conservative default (v7x per-TC VMEM)
    vmem_budget = int(min(vmem_capacity // 2, 40 << 20))
    target_bytes = max(4 << 20, vmem_budget // 4)

    bt, tt, _vmem_used = _choose_tiles(
        b, pred_len, d, itemsize,
        target_bytes=target_bytes, vmem_budget=vmem_budget, min_steps=2)

    grid = (pl.cdiv(b, bt), pl.cdiv(pred_len, tt))

    out_bytes = b * pred_len * d * itemsize
    cost = pl.CostEstimate(
        flops=b * pred_len * d,
        transcendentals=0,
        bytes_accessed=out_bytes + (b * d + pred_len * d) * itemsize,
    )

    # TODO(synk): dropout is identity in inference; training-mode dropout not implemented.
    return pl.pallas_call(
        _damping_kernel,
        out_shape=jax.ShapeDtypeStruct((b, pred_len, d), x.dtype),
        grid_spec=pltpu.PrefetchScalarGridSpec(
            num_scalar_prefetch=0,
            grid=grid,
            in_specs=[
                pl.BlockSpec((bt, d), lambda i, j: (i, 0)),     # batch tile of x
                pl.BlockSpec((tt, d), lambda i, j: (j, 0)),     # time tile of factors
            ],
            out_specs=pl.BlockSpec((bt, tt, d), lambda i, j: (i, j, 0)),
        ),
        compiler_params=pltpu.CompilerParams(
            dimension_semantics=("parallel", "parallel"),
            vmem_limit_bytes=vmem_budget,
        ),
        cost_estimate=cost,
    )(x2, factors_full)


def damping_layer_ref(x, damping_logits, *, pred_len, nhead):
    """Pure-JAX reference matching the PyTorch forward (eval mode)."""
    b, _, d = x.shape
    damping = jax.nn.sigmoid(damping_logits)                              # (1, nhead)
    powers = jnp.arange(1, pred_len + 1, dtype=jnp.float32)[:, None]      # (t, 1)
    factors = jnp.cumsum(damping ** powers, axis=0)                       # (t, nhead)
    xr = jnp.broadcast_to(x, (b, pred_len, d)).reshape(b, pred_len, nhead, -1)
    out = xr * factors[None, :, :, None]
    return out.reshape(b, pred_len, d)


if __name__ == "__main__":
    key = jax.random.PRNGKey(0)

    # --- Small deterministic setup consistent with the module -----------------
    # batch=2, nhead=4, d_head=32 -> d=128, pred_len=8
    b, nhead, d_head, pred_len = 2, 4, 32, 8
    d = nhead * d_head
    kx, kp, key = (*jax.random.split(key, 2), key)
    x = jax.random.normal(kx, (b, 1, d), dtype=jnp.float32)
    damping_logits = jax.random.normal(kp, (1, nhead), dtype=jnp.float32)

    out = damping_layer(x, damping_logits, pred_len=pred_len, nhead=nhead)
    out = jax.block_until_ready(out)
    ref = damping_layer_ref(x, damping_logits, pred_len=pred_len, nhead=nhead)
    assert out.shape == (b, pred_len, d)
    assert jnp.allclose(out, ref, atol=1e-5, rtol=1e-5), "mismatch vs reference (small)"

    # --- Second sanity check exercising the multi-step tiled grid -------------
    b2, nhead2, d_head2, pred_len2 = 16, 8, 64, 24
    d2 = nhead2 * d_head2
    k1, k2 = jax.random.split(jax.random.PRNGKey(1))
    x2 = jax.random.normal(k1, (b2, 1, d2), dtype=jnp.float32)
    logits2 = jax.random.normal(k2, (1, nhead2), dtype=jnp.float32)
    out2 = damping_layer(x2, logits2, pred_len=pred_len2, nhead=nhead2)
    out2 = jax.block_until_ready(out2)
    ref2 = damping_layer_ref(x2, logits2, pred_len=pred_len2, nhead=nhead2)
    assert out2.shape == (b2, pred_len2, d2)
    assert jnp.allclose(out2, ref2, atol=1e-5, rtol=1e-5), "mismatch vs reference (tiled)"

    print("KERNEL_OK")
</pallas_src>

<mosaic_0001>
module attributes {stable_mosaic.version = 11 : i64} {
  func.func @_damping_kernel(%arg0: i32, %arg1: i32, %arg2: memref<2x128xf32, #tpu.memory_space<vmem>>, %arg3: memref<8x128xf32, #tpu.memory_space<vmem>>, %arg4: memref<2x8x128xf32, #tpu.memory_space<vmem>>) attributes {dimension_semantics = [#tpu.dimension_semantics<parallel>, #tpu.dimension_semantics<parallel>], iteration_bounds = array<i64: 1, 1>, scalar_prefetch = 0 : i64, scratch_operands = 0 : i64, tpu.core_type = #tpu.core_type<tc>, window_params = [{transform_indices = @transform_0, window_bounds = array<i64: 2, 128>}, {transform_indices = @transform_1, window_bounds = array<i64: 8, 128>}, {transform_indices = @transform_2, window_bounds = array<i64: 2, 8, 128>}]} {
    %c0 = arith.constant 0 : index
    %c0_0 = arith.constant 0 : index
    %0 = vector.load %arg2[%c0, %c0_0] : memref<2x128xf32, #tpu.memory_space<vmem>>, vector<2x128xf32>
    %c0_1 = arith.constant 0 : index
    %c0_2 = arith.constant 0 : index
    %1 = vector.load %arg3[%c0_1, %c0_2] : memref<8x128xf32, #tpu.memory_space<vmem>>, vector<8x128xf32>
    %2 = vector.shape_cast %0 : vector<2x128xf32> to vector<2x1x128xf32>
    %3 = vector.shape_cast %1 : vector<8x128xf32> to vector<1x8x128xf32>
    %4 = vector.broadcast %2 : vector<2x1x128xf32> to vector<2x8x128xf32>
    %5 = vector.broadcast %3 : vector<1x8x128xf32> to vector<2x8x128xf32>
    %6 = arith.mulf %4, %5 : vector<2x8x128xf32>
    %c0_3 = arith.constant 0 : index
    %c0_4 = arith.constant 0 : index
    %c0_5 = arith.constant 0 : index
    %7 = vector.load %arg4[%c0_3, %c0_4, %c0_5] : memref<2x8x128xf32, #tpu.memory_space<vmem>>, vector<2x8x128xf32>
    tpu.vector_store %arg4[%c0_3, %c0_4, %c0_5], %6 {strides = array<i32>} : memref<2x8x128xf32, #tpu.memory_space<vmem>>, vector<2x8x128xf32>,
    return
  }
  func.func @transform_0(%arg0: i32, %arg1: i32) -> (i32, i32) {
    %c0_i32 = arith.constant 0 : i32
    %c0_i32_0 = arith.constant 0 : i32
    return %arg0, %c0_i32 : i32, i32
  }
  func.func @transform_1(%arg0: i32, %arg1: i32) -> (i32, i32) {
    %c0_i32 = arith.constant 0 : i32
    %c0_i32_0 = arith.constant 0 : i32
    return %arg1, %c0_i32 : i32, i32
  }
  func.func @transform_2(%arg0: i32, %arg1: i32) -> (i32, i32, i32) {
    %c0_i32 = arith.constant 0 : i32
    %c0_i32_0 = arith.constant 0 : i32
    return %arg0, %arg1, %c0_i32 : i32, i32, i32
  }
}

</mosaic_0001>

<llo_original>
// kernel: tpu_custom_call.1
$region0: #{tpu_custom_call.1}
  #allocation0 [shape = 'u32[]', space=smem, size = 0x4, offset = 0x4, fixed_abs, tag = 'smem constant byte address 0x4 - core index']
  #allocation1 [shape = 'u32[144,128]{1,0:T(1,128)}', space=vmem, size = 0x12000, scoped, tag = 'internal scratch']
  %s0 = inlined_call_operand.hbm [shape: f32[2,128], index: 0, kind: input, shape index: {}]
  %s1 = inlined_call_operand.hbm [shape: f32[8,128], index: 1, kind: input, shape index: {}]
  %s2 = inlined_call_operand.hbm [shape: f32[2,8,128], index: 2, kind: output, shape index: {}]
  %s3 = sld [smem:[#allocation0]]
  $region26: #{tpu_custom_call.1} parent=0
    _
  %s5 = ssub.s32 1, %s3
  %s6 = scalar_select 0, %s5, %s3
  $region1: #{tpu_custom_call.1} parent=0
    #allocation2 [shape = 'u8[1024]{0}', space=vmem, size = 0x400, scoped, tag = 'input window, operand 0, single buffered']
    #allocation3 [shape = 's32[1]{0}', space=sflag, size = 0x4, scoped, tag = 'scoped memory for tpu_custom_call.1']
    #allocation4 [shape = 's32[1]{0}', space=sflag, size = 0x4, scoped, tag = 'scoped memory for tpu_custom_call.1']
    #allocation5 [shape = 'u8[4096]{0}', space=vmem, size = 0x1000, scoped, tag = 'input window, operand 1, single buffered']
    #allocation6 [shape = 's32[1]{0}', space=sflag, size = 0x4, scoped, tag = 'scoped memory for tpu_custom_call.1']
    #allocation7 [shape = 'u8[8192]{0}', space=vmem, size = 0x2000, scoped, tag = 'output window, operand 0, single buffered']
    %7 = vsyncpa [#allocation3], 0
    %8 = vsyncpa [#allocation6], 0
    %9 = vsyncpa [#allocation4], 0
    // Predicated region
    $region2: #{tpu_custom_call.1} parent=1 // pred_check
      _
    $region3: #{tpu_custom_call.1} parent=1 // pred_check_branch
      %11 = sbr.rel (0) target = $region5
    $region4: #{tpu_custom_call.1} parent=1 // pred_region
      %s13 = ssub.s32 32, 32
      %14 = vsyncadd [#allocation3], %s13
      %s16 = sshll.u32 [#allocation2], 4
      %s17 = int_to_ptr.vmem [resolvable:$true] %s16
      %19 = dma.hbm_to_vmem [thread:$0]  %s0, 32, %s17, [#allocation3]
    $region5: #{tpu_custom_call.1} parent=1 // pred_fallthru
      _
    // Predicated region
    $region6: #{tpu_custom_call.1} parent=1 // pred_check
      _
    $region7: #{tpu_custom_call.1} parent=1 // pred_check_branch
      %21 = sbr.rel (0) target = $region9
    $region8: #{tpu_custom_call.1} parent=1 // pred_region
      %s23 = ssub.s32 128, 128
      %24 = vsyncadd [#allocation6], %s23
      %s26 = sshll.u32 [#allocation5], 4
      %s27 = int_to_ptr.vmem [resolvable:$true] %s26
      %29 = dma.hbm_to_vmem [thread:$0]  %s1, 128, %s27, [#allocation6]
    $region9: #{tpu_custom_call.1} parent=1 // pred_fallthru
      _
    // Predicated region
    $region10: #{tpu_custom_call.1} parent=1 // pred_check
      _
    $region11: #{tpu_custom_call.1} parent=1 // pred_check_branch
      %31 = sbr.rel (0) target = $region13
    $region12: #{tpu_custom_call.1} parent=1 // pred_region
      %32 = dma.done [#allocation3], 32
    $region13: #{tpu_custom_call.1} parent=1 // pred_fallthru
      _
    // Predicated region
    $region14: #{tpu_custom_call.1} parent=1 // pred_check
      _
    $region15: #{tpu_custom_call.1} parent=1 // pred_check_branch
      %34 = sbr.rel (0) target = $region17
    $region16: #{tpu_custom_call.1} parent=1 // pred_region
      %35 = dma.done [#allocation6], 128
    $region17: #{tpu_custom_call.1} parent=1 // pred_fallthru
      _
    %v36 = vld [vmem:[#allocation2] sm:$0x3]
    %v37 = vld [vmem:[#allocation5] sm:$0xff]
    %v40 = vunpack.c.l.s4 1966171168
    %v41 = vunpack.c.0.s8 %v40
    %v42 = vlaneseq
    %v43 = vshrl.u32 %v42, 7
    %v44 = vsub.s32 %v41, %v43
    %v45 = vrot.slane %v36, %v44
    %v46 = vcombine.high %v45, %v45
    %v48 = vunpack.c.l.s4 1966171168
    %v49 = vunpack.c.0.s8 %v48
    %v50 = vlaneseq
    %v51 = vshrl.u32 %v50, 7
    %v52 = vsub.s32 %v49, %v51
    %v53 = vrot.slane %v45, %v52
    %v55 = vunpack.c.l.s4 1966171168
    %v56 = vunpack.c.0.s8 %v55
    %v57 = vlaneseq
    %v58 = vshrl.u32 %v57, 7
    %v59 = vsub.s32 %v56, %v58
    %v60 = vrot.slane %v46, %v59
    %v61 = vlaneseq
    %v62 = vshrl.u32 %v61, 7
    %v63 = vsub.s32 0, %v62
    %v64 = vrot.slane %v53, %v63
    %v65 = vlaneseq
    %v66 = vshrl.u32 %v65, 7
    %v67 = vsub.s32 0, %v66
    %v68 = vrot.slane %v60, %v67
    %v71 = vmul.f32 %v64, %v37
    %v72 = vmul.f32 %v68, %v37
    %73 = vst [vmem:[#allocation7] sm:$0xff] %v71
    %74 = vst [vmem:[#allocation7 + $0x8] sm:$0xff] %v72
    // Predicated region
    $region18: #{tpu_custom_call.1} parent=1 // pred_check
      _
    $region19: #{tpu_custom_call.1} parent=1 // pred_check_branch
      %76 = sbr.rel (0) target = $region21
    $region20: #{tpu_custom_call.1} parent=1 // pred_region
      %s78 = ssub.s32 256, 256
      %79 = vsyncadd [#allocation4], %s78
      %s80 = sshll.u32 [#allocation7], 4
      %s81 = int_to_ptr.vmem [resolvable:$true] %s80
      %86 = dma.vmem_to_hbm [thread:$0]  %s81, 256, %s2, [#allocation4], 128, 128, 8
    $region21: #{tpu_custom_call.1} parent=1 // pred_fallthru
      _
    // Predicated region
    $region22: #{tpu_custom_call.1} parent=1 // pred_check
      _
    $region23: #{tpu_custom_call.1} parent=1 // pred_check_branch
      %88 = sbr.rel (0) target = $region25
    $region24: #{tpu_custom_call.1} parent=1 // pred_region
      %89 = dma.done [#allocation4], 256
    $region25: #{tpu_custom_call.1} parent=1 // pred_fallthru
      _
    %90 = vsyncpa [#allocation3], 1
    %91 = vsyncpa [#allocation6], 1
    %92 = vsyncpa [#allocation4], 1

</llo_original>
